<compile_context>
chip_gen: v7x
topology: tpu7x:2x2x1
jax: 0.10.0
libtpu: 0.0.40
codegen_flags: <defaults>
</compile_context>

<pallas_src>
import numpy as np
import jax
import jax.numpy as jnp
from jax import lax
from jax.experimental import pallas as pl
from jax.experimental.pallas import tpu as pltpu

NUM_CLASSES = 5          # node classes (e.g. particle type)
NEG = -1e30              # padding logit value (safe in f32 LSE)
MAX_TN = 16384           # max nodes per grid step (lane axis), multiple of 128


def _round_up(x, m):
    return ((x + m - 1) // m) * m


def _cdiv(a, b):
    return -(-a // b)


def _num_tensorcores():
    """2 TensorCores per chip on v7x; 1 on v5e/v6e. Conservative fallback: 1."""
    try:
        kind = jax.devices()[0].device_kind.lower()
    except Exception:
        return 1
    return 2 if 'v7' in kind else 1


# Layout:
#   logits tile : (C_PAD, TN) f32 — classes on the sublane axis (padded with
#                 NEG), nodes lane-dense on the 128-lane axis.
#   labels tile : (1, TN) int32, -1 means "ignore" (padding or ignore_index).
#   output      : (n_cores*8, 128) f32; each core writes one (8,128) block,
#                 row 0 lanes 0/1/2 = CE loss sum / #correct / #valid.
#   scratch     : one (8, TN) f32 buffer; rows 0/1/2 hold per-lane partials.
def _node_ce_kernel(logit_ref, lab_ref, out_ref, part_ref):
    # grid = (cores, tiles); axis 0 is "parallel" (megacore), axis 1 reduction.
    t = pl.program_id(1)

    @pl.when(t == 0)
    def _():
        part_ref[...] = jnp.zeros_like(part_ref)

    logits = logit_ref[...]                        # (C_PAD, TN) f32
    labels = lab_ref[...]                          # (1, TN)     int32
    valid = labels > -1                            # (1, TN)     bool

    # stable log-sum-exp per node (reduce over the small sublane class axis)
    m = jnp.max(logits, axis=0, keepdims=True)                              # (1,TN)
    lse = m + jnp.log(jnp.sum(jnp.exp(logits - m), axis=0, keepdims=True))  # (1,TN)

    # logit of the target class (one-hot via sublane iota, broadcast labels)
    row = lax.broadcasted_iota(jnp.int32, logits.shape, 0)                  # (C_PAD,TN)
    label_logit = jnp.sum(jnp.where(row == labels, logits, 0.0),
                          axis=0, keepdims=True)                            # (1,TN)

    # accuracy: correct iff the target-class logit equals the per-node max.
    # (Ties between exactly-equal logits count as correct here, unlike
    #  argmax-first-index; negligible for real logits, saves one XLU reduce.)
    correct = valid & (label_logit == m)                                    # (1,TN)

    # per-lane partial accumulation into the merged scratch (rows 0/1/2)
    part_ref[0:1, :] += jnp.where(valid, lse - label_logit, 0.0)
    part_ref[1:2, :] += jnp.where(correct, 1.0, 0.0)
    part_ref[2:3, :] += valid.astype(jnp.float32)

    # single cross-lane reduction + lane-dense output write per core at the end
    @pl.when(t == pl.num_programs(1) - 1)
    def _():
        loss_t = jnp.sum(part_ref[0:1, :])
        acc_t = jnp.sum(part_ref[1:2, :])
        cnt_t = jnp.sum(part_ref[2:3, :])
        sub = lax.broadcasted_iota(jnp.int32, (8, 128), 0)
        lane = lax.broadcasted_iota(jnp.int32, (8, 128), 1)
        out_ref[...] = jnp.where(
            (sub == 0) & (lane == 0), loss_t,
            jnp.where((sub == 0) & (lane == 1), acc_t,
                      jnp.where((sub == 0) & (lane == 2), cnt_t, 0.0)))


def masked_ce_sum_and_acc(node_pred, node_assn):
    """node_pred: (N, C) float, node_assn: (N,) int (-1 = ignore).
    Returns host floats (loss_sum, n_correct, n_valid)."""
    node_pred = np.asarray(node_pred, dtype=np.float32)
    node_assn = np.asarray(node_assn, dtype=np.int32)
    n, c = node_pred.shape

    c_pad = _round_up(max(c, 1), 8)                      # classes -> sublanes
    tn = min(MAX_TN, _round_up(max(n, 1), 128))          # nodes   -> lanes
    n_tiles = _cdiv(max(n, 1), tn)
    n_cores = min(_num_tensorcores(), n_tiles)           # v7x-only 2-way split
    tiles_per_core = _cdiv(n_tiles, n_cores)
    n_pad = n_cores * tiles_per_core * tn

    # host-side transpose + pad: buffers arrive in kernel layout via a single
    # H2D copy each (no eager on-device transpose / pad / relayout).
    logits = np.full((c_pad, n_pad), NEG, dtype=np.float32)
    logits[:c, :n] = node_pred.T
    labels = np.full((1, n_pad), -1, dtype=np.int32)
    labels[0, :n] = node_assn

    out = pl.pallas_call(
        _node_ce_kernel,
        out_shape=jax.ShapeDtypeStruct((n_cores * 8, 128), jnp.float32),
        grid_spec=pltpu.PrefetchScalarGridSpec(
            num_scalar_prefetch=0,
            grid=(n_cores, tiles_per_core),
            in_specs=[pl.BlockSpec((c_pad, tn),
                                   lambda cr, t: (0, cr * tiles_per_core + t)),
                      pl.BlockSpec((1, tn),
                                   lambda cr, t: (0, cr * tiles_per_core + t))],
            out_specs=pl.BlockSpec((8, 128), lambda cr, t: (cr, 0)),
            scratch_shapes=[pltpu.VMEM((8, tn), jnp.float32)],
        ),
        compiler_params=pltpu.CompilerParams(
            dimension_semantics=("parallel", "arbitrary"),
            vmem_limit_bytes=32 * 1024 * 1024),
    )(logits, labels)

    # single D2H readback; sum the per-core partials on the host
    vals = np.asarray(jax.device_get(out)).reshape(n_cores, 8, 128)
    totals = vals[:, 0, :].sum(axis=0)
    return float(totals[0]), float(totals[1]), float(totals[2])


def get_cluster_label(labels, clusts, column=7):
    """Majority label of `column` among voxels of each cluster (numpy glue)."""
    out = np.empty(len(clusts), dtype=np.int64)
    for k, cl in enumerate(clusts):
        vals, counts = np.unique(labels[cl, column], return_counts=True)
        out[k] = int(vals[np.argmax(counts)])
    return out


class NodeTypeLossPallas:
    """Pallas-backed NodeTypeLoss (defaults: loss='CE', reduction='sum')."""

    def __init__(self, loss_config, batch_col=0, coords_col=(1, 4)):
        self.batch_col = batch_col
        self.coords_col = coords_col
        self.target_col = loss_config.get('target_col', 7)
        self.loss = loss_config.get('loss', 'CE')
        self.reduction = loss_config.get('reduction', 'sum')
        self.balance_classes = loss_config.get('balance_classes', False)
        if self.loss != 'CE' or self.reduction != 'sum' or self.balance_classes:
            # TODO(synk): 'MM'/'EVD' losses, 'mean' reduction and balance_classes
            # branch not implemented in the Pallas path.
            raise NotImplementedError('Only CE / sum / unbalanced supported')

    def forward(self, out, types):
        preds, assns = [], []
        for i in range(len(types)):
            if 'node_pred' not in out:
                continue
            labels_all = np.asarray(types[i])
            batches = labels_all[:, self.batch_col]
            nbatches = len(np.unique(batches))
            for j in range(nbatches):
                # NOTE: filters by the loop index j, matching the original
                # module's semantics (assumes contiguous batch ids 0..K-1).
                labels = labels_all[batches == j]
                node_pred = out['node_pred'][i][j]
                if node_pred.shape[0] == 0:
                    continue
                clusts = out['clusts'][i][j]
                node_assn = get_cluster_label(labels, clusts,
                                              column=self.target_col)
                preds.append(np.asarray(node_pred, dtype=np.float32))
                assns.append(node_assn.astype(np.int32))

        if not preds:
            return {'accuracy': 0.0, 'loss': 0.0, 'n_clusts': 0}

        node_pred = np.concatenate(preds, axis=0)
        node_assn = np.concatenate(assns, axis=0)

        # Since reduction='sum', the sum of per-(event,batch) CE losses over the
        # masked nodes equals one global masked CE-sum over the concatenation.
        loss_sum, acc_cnt, n_valid = masked_ce_sum_and_acc(node_pred, node_assn)
        n_clusts = int(round(n_valid))
        if n_clusts == 0:
            return {'accuracy': 0.0, 'loss': 0.0, 'n_clusts': 0}
        return {'accuracy': acc_cnt / n_valid,
                'loss': loss_sum / n_valid,
                'n_clusts': n_clusts}


def _ref_numpy(node_pred, node_assn):
    mask = node_assn > -1
    lg = node_pred[mask].astype(np.float64)
    lb = node_assn[mask]
    m = lg.max(axis=1, keepdims=True)
    lse = m[:, 0] + np.log(np.exp(lg - m).sum(axis=1))
    loss = (lse - lg[np.arange(len(lb)), lb]).sum()
    acc = (lg.argmax(axis=1) == lb).sum()
    n = mask.sum()
    return loss / n, acc / n, n


if __name__ == "__main__":
    key = jax.random.PRNGKey(0)

    n_events = 2
    n_batches = 2
    vox_per_batch = 16
    vox_per_clust = 4
    clusts_per_batch = vox_per_batch // vox_per_clust

    types_list = []
    node_pred_out = []
    clusts_out = []
    np_rng = np.random.RandomState(0)

    for i in range(n_events):
        rows = []
        ev_preds, ev_clusts = [], []
        for j in range(n_batches):
            # voxel labels: col 0 = batch id, col 7 = class (one ignored cluster)
            cls_per_clust = np_rng.randint(0, NUM_CLASSES, size=clusts_per_batch)
            cls_per_clust[0] = -1  # exercise ignore_index=-1 path
            vox_cls = np.repeat(cls_per_clust, vox_per_clust)
            block = np_rng.rand(vox_per_batch, 8).astype(np.float32)
            block[:, 0] = j
            block[:, 7] = vox_cls
            rows.append(block)

            key, sub = jax.random.split(key)
            ev_preds.append(jax.random.normal(sub, (clusts_per_batch, NUM_CLASSES),
                                              dtype=jnp.float32))
            ev_clusts.append([np.arange(c * vox_per_clust, (c + 1) * vox_per_clust)
                              for c in range(clusts_per_batch)])
        types_list.append(np.concatenate(rows, axis=0))   # (32, 8)
        node_pred_out.append(ev_preds)
        clusts_out.append(ev_clusts)

    out = {'node_pred': node_pred_out, 'clusts': clusts_out}

    loss_mod = NodeTypeLossPallas({'loss': 'CE', 'reduction': 'sum',
                                   'target_col': 7})
    res = loss_mod.forward(out, types_list)
    jax.block_until_ready(res['loss'])
    jax.block_until_ready(res['accuracy'])

    # reference check (pure numpy) on the same concatenated inputs
    all_pred, all_assn = [], []
    for i in range(n_events):
        lab_all = types_list[i]
        for j in range(n_batches):
            labels = lab_all[lab_all[:, 0] == j]
            all_pred.append(np.asarray(node_pred_out[i][j]))
            all_assn.append(get_cluster_label(labels, clusts_out[i][j], column=7))
    ref_loss, ref_acc, ref_n = _ref_numpy(np.concatenate(all_pred),
                                          np.concatenate(all_assn))

    assert res['n_clusts'] == ref_n
    assert np.allclose(float(res['loss']), ref_loss, rtol=1e-4, atol=1e-5)
    assert np.allclose(float(res['accuracy']), ref_acc, rtol=1e-6, atol=1e-6)

    print("KERNEL_OK")
</pallas_src>

<mosaic_0001>
module attributes {stable_mosaic.version = 11 : i64} {
  func.func @_node_ce_kernel(%arg0: i32, %arg1: i32, %arg2: memref<8x128xf32, #tpu.memory_space<vmem>>, %arg3: memref<1x128xi32, #tpu.memory_space<vmem>>, %arg4: memref<8x128xf32, #tpu.memory_space<vmem>>, %arg5: memref<8x128xf32, #tpu.memory_space<vmem>>) attributes {dimension_semantics = [#tpu.dimension_semantics<parallel>, #tpu.dimension_semantics<arbitrary>], iteration_bounds = array<i64: 1, 1>, scalar_prefetch = 0 : i64, scratch_operands = 1 : i64, tpu.core_type = #tpu.core_type<tc>, window_params = [{transform_indices = @transform_0, window_bounds = array<i64: 8, 128>}, {transform_indices = @transform_1, window_bounds = array<i64: 1, 128>}, {transform_indices = @transform_2, window_bounds = array<i64: 8, 128>}]} {
    %c0_i32 = arith.constant 0 : i32
    %0 = arith.cmpi eq, %arg1, %c0_i32 : i32
    %1 = arith.extui %0 : i1 to i32
    %c0_i32_0 = arith.constant 0 : i32
    %2 = arith.cmpi ne, %1, %c0_i32_0 : i32
    scf.if %2 {
      %cst_22 = arith.constant 0.000000e+00 : f32
      %45 = vector.broadcast %cst_22 : f32 to vector<8x128xf32>
      %c0_23 = arith.constant 0 : index
      %c0_24 = arith.constant 0 : index
      %46 = vector.load %arg5[%c0_23, %c0_24] : memref<8x128xf32, #tpu.memory_space<vmem>>, vector<8x128xf32>
      tpu.vector_store %arg5[%c0_23, %c0_24], %45 {strides = array<i32>} : memref<8x128xf32, #tpu.memory_space<vmem>>, vector<8x128xf32>,
    } else {
    }
    %c0 = arith.constant 0 : index
    %c0_1 = arith.constant 0 : index
    %3 = vector.load %arg2[%c0, %c0_1] : memref<8x128xf32, #tpu.memory_space<vmem>>, vector<8x128xf32>
    %c0_2 = arith.constant 0 : index
    %c0_3 = arith.constant 0 : index
    %4 = vector.load %arg3[%c0_2, %c0_3] : memref<1x128xi32, #tpu.memory_space<vmem>>, vector<1x128xi32>
    %c-1_i32 = arith.constant -1 : i32
    %5 = vector.broadcast %c-1_i32 : i32 to vector<1x128xi32>
    %6 = arith.cmpi sgt, %4, %5 : vector<1x128xi32>
    %cst = arith.constant dense<0xFF800000> : vector<128xf32>
    %7 = vector.multi_reduction <maximumf>, %3, %cst [0] : vector<8x128xf32> to vector<128xf32>
    %8 = vector.shape_cast %7 : vector<128xf32> to vector<1x128xf32>
    %9 = vector.broadcast %8 : vector<1x128xf32> to vector<8x128xf32>
    %10 = arith.subf %3, %9 : vector<8x128xf32>
    %11 = math.exp %10 : vector<8x128xf32>
    %cst_4 = arith.constant dense<0.000000e+00> : vector<128xf32>
    %12 = vector.multi_reduction <add>, %11, %cst_4 [0] : vector<8x128xf32> to vector<128xf32>
    %13 = vector.shape_cast %12 : vector<128xf32> to vector<1x128xf32>
    %14 = math.log %13 : vector<1x128xf32>
    %15 = arith.addf %8, %14 : vector<1x128xf32>
    %16 = tpu.iota {dimensions = array<i32: 0>} : vector<8x128xi32>
    %17 = vector.broadcast %4 : vector<1x128xi32> to vector<8x128xi32>
    %18 = arith.cmpi eq, %16, %17 : vector<8x128xi32>
    %cst_5 = arith.constant 0.000000e+00 : f32
    %19 = vector.broadcast %cst_5 : f32 to vector<8x128xf32>
    %20 = arith.select %18, %3, %19 : vector<8x128xi1>, vector<8x128xf32>
    %cst_6 = arith.constant dense<0.000000e+00> : vector<128xf32>
    %21 = vector.multi_reduction <add>, %20, %cst_6 [0] : vector<8x128xf32> to vector<128xf32>
    %22 = vector.shape_cast %21 : vector<128xf32> to vector<1x128xf32>
    %23 = arith.cmpf oeq, %22, %8 : vector<1x128xf32>
    %24 = arith.andi %6, %23 : vector<1x128xi1>
    %c0_7 = arith.constant 0 : index
    %c0_8 = arith.constant 0 : index
    %25 = vector.load %arg5[%c0_7, %c0_8] : memref<8x128xf32, #tpu.memory_space<vmem>>, vector<1x128xf32>
    %26 = arith.subf %15, %22 : vector<1x128xf32>
    %cst_9 = arith.constant 0.000000e+00 : f32
    %27 = vector.broadcast %cst_9 : f32 to vector<1x128xf32>
    %28 = arith.select %6, %26, %27 : vector<1x128xi1>, vector<1x128xf32>
    %29 = arith.addf %25, %28 : vector<1x128xf32>
    %c0_10 = arith.constant 0 : index
    %c0_11 = arith.constant 0 : index
    %30 = vector.load %arg5[%c0_10, %c0_11] : memref<8x128xf32, #tpu.memory_space<vmem>>, vector<1x128xf32>
    tpu.vector_store %arg5[%c0_10, %c0_11], %29 {strides = array<i32>} : memref<8x128xf32, #tpu.memory_space<vmem>>, vector<1x128xf32>,
    %c1 = arith.constant 1 : index
    %c0_12 = arith.constant 0 : index
    %31 = vector.load %arg5[%c1, %c0_12] : memref<8x128xf32, #tpu.memory_space<vmem>>, vector<1x128xf32>
    %cst_13 = arith.constant 1.000000e+00 : f32
    %cst_14 = arith.constant 0.000000e+00 : f32
    %32 = vector.broadcast %cst_13 : f32 to vector<1x128xf32>
    %33 = vector.broadcast %cst_14 : f32 to vector<1x128xf32>
    %34 = arith.select %24, %32, %33 : vector<1x128xi1>, vector<1x128xf32>
    %35 = arith.addf %31, %34 : vector<1x128xf32>
    %c1_15 = arith.constant 1 : index
    %c0_16 = arith.constant 0 : index
    %36 = vector.load %arg5[%c1_15, %c0_16] : memref<8x128xf32, #tpu.memory_space<vmem>>, vector<1x128xf32>
    tpu.vector_store %arg5[%c1_15, %c0_16], %35 {strides = array<i32>} : memref<8x128xf32, #tpu.memory_space<vmem>>, vector<1x128xf32>,
    %c2 = arith.constant 2 : index
    %c0_17 = arith.constant 0 : index
    %37 = vector.load %arg5[%c2, %c0_17] : memref<8x128xf32, #tpu.memory_space<vmem>>, vector<1x128xf32>
    %38 = arith.extui %6 : vector<1x128xi1> to vector<1x128xi32>
    %39 = arith.sitofp %38 : vector<1x128xi32> to vector<1x128xf32>
    %40 = arith.addf %37, %39 : vector<1x128xf32>
    %c2_18 = arith.constant 2 : index
    %c0_19 = arith.constant 0 : index
    %41 = vector.load %arg5[%c2_18, %c0_19] : memref<8x128xf32, #tpu.memory_space<vmem>>, vector<1x128xf32>
    tpu.vector_store %arg5[%c2_18, %c0_19], %40 {strides = array<i32>} : memref<8x128xf32, #tpu.memory_space<vmem>>, vector<1x128xf32>,
    %c0_i32_20 = arith.constant 0 : i32
    %42 = arith.cmpi eq, %arg1, %c0_i32_20 : i32
    %43 = arith.extui %42 : i1 to i32
    %c0_i32_21 = arith.constant 0 : i32
    %44 = arith.cmpi ne, %43, %c0_i32_21 : i32
    scf.if %44 {
      %c0_22 = arith.constant 0 : index
      %c0_23 = arith.constant 0 : index
      %45 = vector.load %arg5[%c0_22, %c0_23] : memref<8x128xf32, #tpu.memory_space<vmem>>, vector<1x128xf32>
      %46 = vector.shape_cast %45 : vector<1x128xf32> to vector<1x1x128xf32>
      %cst_24 = arith.constant dense<0.000000e+00> : vector<1xf32>
      %47 = vector.multi_reduction <add>, %46, %cst_24 [1, 2] : vector<1x1x128xf32> to vector<1xf32>
      %48 = vector.shape_cast %47 : vector<1xf32> to vector<1x1x1xf32>
      %49 = vector.extract %48[0, 0, 0] : f32 from vector<1x1x1xf32>
      %c1_25 = arith.constant 1 : index
      %c0_26 = arith.constant 0 : index
      %50 = vector.load %arg5[%c1_25, %c0_26] : memref<8x128xf32, #tpu.memory_space<vmem>>, vector<1x128xf32>
      %51 = vector.shape_cast %50 : vector<1x128xf32> to vector<1x1x128xf32>
      %cst_27 = arith.constant dense<0.000000e+00> : vector<1xf32>
      %52 = vector.multi_reduction <add>, %51, %cst_27 [1, 2] : vector<1x1x128xf32> to vector<1xf32>
      %53 = vector.shape_cast %52 : vector<1xf32> to vector<1x1x1xf32>
      %54 = vector.extract %53[0, 0, 0] : f32 from vector<1x1x1xf32>
      %c2_28 = arith.constant 2 : index
      %c0_29 = arith.constant 0 : index
      %55 = vector.load %arg5[%c2_28, %c0_29] : memref<8x128xf32, #tpu.memory_space<vmem>>, vector<1x128xf32>
      %56 = vector.shape_cast %55 : vector<1x128xf32> to vector<1x1x128xf32>
      %cst_30 = arith.constant dense<0.000000e+00> : vector<1xf32>
      %57 = vector.multi_reduction <add>, %56, %cst_30 [1, 2] : vector<1x1x128xf32> to vector<1xf32>
      %58 = vector.shape_cast %57 : vector<1xf32> to vector<1x1x1xf32>
      %59 = vector.extract %58[0, 0, 0] : f32 from vector<1x1x1xf32>
      %60 = tpu.iota {dimensions = array<i32: 0>} : vector<8x128xi32>
      %61 = tpu.iota {dimensions = array<i32: 1>} : vector<8x128xi32>
      %c0_i32_31 = arith.constant 0 : i32
      %62 = vector.broadcast %c0_i32_31 : i32 to vector<8x128xi32>
      %63 = arith.cmpi eq, %60, %62 : vector<8x128xi32>
      %c0_i32_32 = arith.constant 0 : i32
      %64 = vector.broadcast %c0_i32_32 : i32 to vector<8x128xi32>
      %65 = arith.cmpi eq, %61, %64 : vector<8x128xi32>
      %66 = arith.andi %63, %65 : vector<8x128xi1>
      %c0_i32_33 = arith.constant 0 : i32
      %67 = vector.broadcast %c0_i32_33 : i32 to vector<8x128xi32>
      %68 = arith.cmpi eq, %60, %67 : vector<8x128xi32>
      %c1_i32 = arith.constant 1 : i32
      %69 = vector.broadcast %c1_i32 : i32 to vector<8x128xi32>
      %70 = arith.cmpi eq, %61, %69 : vector<8x128xi32>
      %71 = arith.andi %68, %70 : vector<8x128xi1>
      %c0_i32_34 = arith.constant 0 : i32
      %72 = vector.broadcast %c0_i32_34 : i32 to vector<8x128xi32>
      %73 = arith.cmpi eq, %60, %72 : vector<8x128xi32>
      %c2_i32 = arith.constant 2 : i32
      %74 = vector.broadcast %c2_i32 : i32 to vector<8x128xi32>
      %75 = arith.cmpi eq, %61, %74 : vector<8x128xi32>
      %76 = arith.andi %73, %75 : vector<8x128xi1>
      %cst_35 = arith.constant 0.000000e+00 : f32
      %77 = vector.broadcast %59 : f32 to vector<8x128xf32>
      %78 = vector.broadcast %cst_35 : f32 to vector<8x128xf32>
      %79 = arith.select %76, %77, %78 : vector<8x128xi1>, vector<8x128xf32>
      %80 = vector.broadcast %54 : f32 to vector<8x128xf32>
      %81 = arith.select %71, %80, %79 : vector<8x128xi1>, vector<8x128xf32>
      %82 = vector.broadcast %49 : f32 to vector<8x128xf32>
      %83 = arith.select %66, %82, %81 : vector<8x128xi1>, vector<8x128xf32>
      %c0_36 = arith.constant 0 : index
      %c0_37 = arith.constant 0 : index
      %84 = vector.load %arg4[%c0_36, %c0_37] : memref<8x128xf32, #tpu.memory_space<vmem>>, vector<8x128xf32>
      tpu.vector_store %arg4[%c0_36, %c0_37], %83 {strides = array<i32>} : memref<8x128xf32, #tpu.memory_space<vmem>>, vector<8x128xf32>,
    } else {
    }
    return
  }
  func.func @transform_0(%arg0: i32, %arg1: i32) -> (i32, i32) {
    %c1_i32 = arith.constant 1 : i32
    %0 = arith.muli %arg0, %c1_i32 : i32
    %1 = arith.addi %0, %arg1 : i32
    %c0_i32 = arith.constant 0 : i32
    %c0_i32_0 = arith.constant 0 : i32
    return %c0_i32, %1 : i32, i32
  }
  func.func @transform_1(%arg0: i32, %arg1: i32) -> (i32, i32) {
    %c1_i32 = arith.constant 1 : i32
    %0 = arith.muli %arg0, %c1_i32 : i32
    %1 = arith.addi %0, %arg1 : i32
    %c0_i32 = arith.constant 0 : i32
    %c0_i32_0 = arith.constant 0 : i32
    return %c0_i32, %1 : i32, i32
  }
  func.func @transform_2(%arg0: i32, %arg1: i32) -> (i32, i32) {
    %c0_i32 = arith.constant 0 : i32
    %c0_i32_0 = arith.constant 0 : i32
    return %arg0, %c0_i32 : i32, i32
  }
}

</mosaic_0001>

<llo_original>
// kernel: tpu_custom_call.1
$region0: #{tpu_custom_call.1}
  #allocation0 [shape = 'u32[]', space=smem, size = 0x4, offset = 0x4, fixed_abs, tag = 'smem constant byte address 0x4 - core index']
  #allocation1 [shape = 'u32[144,128]{1,0:T(1,128)}', space=vmem, size = 0x12000, scoped, tag = 'internal scratch']
  #allocation2 [shape = 'f32[8,128]{1,0:T(8,128)}', space=vmem, size = 0x1000, scoped, tag = 'scratch operand']
  %s0 = inlined_call_operand.hbm [shape: f32[8,128], index: 0, kind: input, shape index: {}]
  %s1 = inlined_call_operand.vmem [shape: s32[1,128], index: 1, kind: input, shape index: {}]
  %s2 = inlined_call_operand.hbm [shape: f32[8,128], index: 2, kind: output, shape index: {}]
  %s3 = sld [smem:[#allocation0]]
  $region30: #{tpu_custom_call.1} parent=0
    _
  %s5 = ssub.s32 1, %s3
  %s6 = scalar_select 0, %s5, %s3
  $region1: #{tpu_custom_call.1} parent=0
    #allocation3 [shape = 'u8[4096]{0}', space=vmem, size = 0x1000, scoped, tag = 'input window, operand 0, single buffered']
    #allocation4 [shape = 's32[1]{0}', space=sflag, size = 0x4, scoped, tag = 'scoped memory for tpu_custom_call.1']
    #allocation5 [shape = 's32[1]{0}', space=sflag, size = 0x4, scoped, tag = 'scoped memory for tpu_custom_call.1']
    #allocation6 [shape = 'u8[4096]{0}', space=vmem, size = 0x1000, scoped, tag = 'output window, operand 0, single buffered']
    %7 = vsyncpa [#allocation4], 0
    %8 = vsyncpa [#allocation5], 0
    // Predicated region
    $region2: #{tpu_custom_call.1} parent=1 // pred_check
      _
    $region3: #{tpu_custom_call.1} parent=1 // pred_check_branch
      %10 = sbr.rel (0) target = $region5
    $region4: #{tpu_custom_call.1} parent=1 // pred_region
      %s11 = sadd.s32 0, 0
      %s13 = ssub.s32 128, 128
      %14 = vsyncadd [#allocation4], %s13
      %s15 = smul.addr %s11, 128
      %s16 = scalar_lea.hbm %s0, %s15
      %s18 = sshll.u32 [#allocation3], 4
      %s19 = int_to_ptr.vmem [resolvable:$true] %s18
      %21 = dma.hbm_to_vmem [thread:$0]  %s16, 128, %s19, [#allocation4]
    $region5: #{tpu_custom_call.1} parent=1 // pred_fallthru
      _
    // Predicated region
    $region6: #{tpu_custom_call.1} parent=1 // pred_check
      _
    $region7: #{tpu_custom_call.1} parent=1 // pred_check_branch
      %23 = sbr.rel (0) target = $region9
    $region8: #{tpu_custom_call.1} parent=1 // pred_region
      %s24 = sadd.s32 0, 0
      %p25 = scmp.lt.s32.totalorder %s24, 0
      %s26 = scalar_select %p25, %s24, 0
      %s27 = scalar_lea.vmem %s1, %s26
      %s28 = sadd.s32 0, 0
    $region9: #{tpu_custom_call.1} parent=1 // pred_fallthru
      _
    // Predicated region
    $region10: #{tpu_custom_call.1} parent=1 // pred_check
      _
    $region11: #{tpu_custom_call.1} parent=1 // pred_check_branch
      %30 = sbr.rel (0) target = $region13
    $region12: #{tpu_custom_call.1} parent=1 // pred_region
      %31 = dma.done [#allocation4], 128
    $region13: #{tpu_custom_call.1} parent=1 // pred_fallthru
      _
    %s32 = sadd.s32 0, 0
    %p33 = scmp.lt.s32.totalorder %s32, 0
    %s34 = scalar_select %p33, %s32, 0
    %s35 = scalar_lea.vmem %s1, %s34
    %s36 = sadd.s32 0, 0
    %s37 = sadd.s32 0, 0
    %p38 = scmp.lt.s32.totalorder %s37, 0
    %s39 = scalar_select %p38, %s37, 0
    %s40 = scalar_lea.vmem %s1, %s39
    %s41 = sadd.s32 0, 0
    %p42 = scmp.eq.s32.totalorder 0, 0
    // Predicated region
    $region14: #{tpu_custom_call.1} parent=1 // pred_check
      %p43 = pneg %p42
    $region15: #{tpu_custom_call.1} parent=1 // pred_check_branch
      %45 = sbr.rel (%p43) target = $region17
    $region16: #{tpu_custom_call.1} parent=1 // pred_region
      %46 = vst [vmem:[#allocation2] sm:$0xff] 0.0
    $region17: #{tpu_custom_call.1} parent=1 // pred_fallthru
      _
    %v47 = vld [vmem:[#allocation3] sm:$0xff]
    %v48 = vld [vmem:[%s40] sm:$0x1]
    %vm49 = vcmp.gt.s32.totalorder %v48, 4294967295
    %v50 = vrot.slane %v47, 4
    %v51 = vmax.f32 %v47, %v50
    %v52 = vrot.slane %v51, 2
    %v53 = vmax.f32 %v51, %v52
    %v54 = vrot.slane %v53, 1
    %v55 = vmax.f32 %v53, %v54
    %v56 = vsub.f32 %v47, %v55
    %v57 = vmul.f32 %v56, 1.442695
    %v58 = vpow.pop %v57
    %v59 = vrot.slane %v58, 4
    %v60 = vadd.f32 %v58, %v59
    %v61 = vrot.slane %v60, 2
    %v62 = vadd.f32 %v60, %v61
    %v63 = vrot.slane %v62, 1
    %v64 = vadd.f32 %v62, %v63
    %v65 = vlog2.pop %v64
    %v66 = vmul.f32 %v65, 0.6931472
    %v67 = vadd.f32 %v55, %v66
    %v68 = vlaneseq
    %v69 = vshrl.u32 %v68, 7
    %v70 = vlaneseq
    %v71 = vshrl.u32 %v70, 7
    %v72 = vsub.s32 0, %v71
    %v73 = vrot.slane %v48, %v72
    %vm74 = vcmp.eq.s32.totalorder %v69, %v73
    %v75 = vsel %vm74, %v47, 0.0
    %v76 = vrot.slane %v75, 4
    %v77 = vadd.f32 %v75, %v76
    %v78 = vrot.slane %v77, 2
    %v79 = vadd.f32 %v77, %v78
    %v80 = vrot.slane %v79, 1
    %v81 = vadd.f32 %v79, %v80
    %vm82 = vcmp.eq.f32.partialorder %v81, %v55
    %vm83 = vmand %vm49, %vm82
    %v84 = vld [vmem:[#allocation2] sm:$0x1]
    %v85 = vsub.f32 %v67, %v81
    %v86 = vsel %vm49, %v85, 0.0
    %v87 = vadd.f32 %v84, %v86
    %88 = vst [vmem:[#allocation2] sm:$0x1] %v87
    %v89 = vld [vmem:[#allocation2 + $0x1] sm:$0x1]
    %v90 = vsel %vm83, 1.0, 0.0
    %v91 = vadd.f32 %v89, %v90
    %92 = vst [vmem:[#allocation2 + $0x1] sm:$0x1] %v91
    %v93 = vld [vmem:[#allocation2 + $0x2] sm:$0x1]
    %v94 = vsel %vm49, 1, 0
    %v95 = vcvt.s32.f32 %v94
    %v96 = vadd.f32 %v93, %v95
    %97 = vst [vmem:[#allocation2 + $0x2] sm:$0x1] %v96
    // Predicated region
    $region18: #{tpu_custom_call.1} parent=1 // pred_check
      %p98 = pneg %p42
    $region19: #{tpu_custom_call.1} parent=1 // pred_check_branch
      %100 = sbr.rel (%p98) target = $region21
    $region20: #{tpu_custom_call.1} parent=1 // pred_region
      %v101 = vld [vmem:[#allocation2] sm:$0x1]
      %vm102 = vcmask 1040384
      %v103 = vsel %vm102, %v101, 0.0
      %104 = vadd.xlane.f32.xlu0 %v103
      %v105 = vpop.xlane.xlu0 %104
      %v106 = vrot.slane %v105, 4
      %v107 = vadd.f32 %v105, %v106
      %v108 = vrot.slane %v107, 2
      %v109 = vadd.f32 %v107, %v108
      %v110 = vrot.slane %v109, 1
      %v111 = vadd.f32 %v109, %v110
      %s112 = vtos %v111
      %v113 = vld [vmem:[#allocation2 + $0x1] sm:$0x1]
      %v114 = vsel %vm102, %v113, 0.0
      %115 = vadd.xlane.f32.xlu0 %v114
      %v116 = vpop.xlane.xlu0 %115
      %v117 = vrot.slane %v116, 4
      %v118 = vadd.f32 %v116, %v117
      %v119 = vrot.slane %v118, 2
      %v120 = vadd.f32 %v118, %v119
      %v121 = vrot.slane %v120, 1
      %v122 = vadd.f32 %v120, %v121
      %s123 = vtos %v122
      %v124 = vld [vmem:[#allocation2 + $0x2] sm:$0x1]
      %v125 = vsel %vm102, %v124, 0.0
      %126 = vadd.xlane.f32.xlu0 %v125
      %v127 = vpop.xlane.xlu0 %126
      %v128 = vrot.slane %v127, 4
      %v129 = vadd.f32 %v127, %v128
      %v130 = vrot.slane %v129, 2
      %v131 = vadd.f32 %v129, %v130
      %v132 = vrot.slane %v131, 1
      %v133 = vadd.f32 %v131, %v132
      %s134 = vtos %v133
      %v135 = vlaneseq
      %v136 = vand.u32 %v135, 127
      %vm137 = vcmp.eq.s32.totalorder %v69, 0
      %vm138 = vcmp.eq.s32.totalorder %v136, 0
      %vm139 = vmand %vm137, %vm138
      %vm140 = vcmp.eq.s32.totalorder %v136, 1
      %vm141 = vmand %vm137, %vm140
      %vm142 = vcmp.eq.s32.totalorder %v136, 2
      %vm143 = vmand %vm137, %vm142
      %v144 = vstv %s134
      %v145 = vsel %vm143, %v144, 0.0
      %v146 = vstv %s123
      %v147 = vsel %vm141, %v146, %v145
      %v148 = vstv %s112
      %v149 = vsel %vm139, %v148, %v147
      %150 = vst [vmem:[#allocation6] sm:$0xff] %v149
    $region21: #{tpu_custom_call.1} parent=1 // pred_fallthru
      _
    // Predicated region
    $region22: #{tpu_custom_call.1} parent=1 // pred_check
      _
    $region23: #{tpu_custom_call.1} parent=1 // pred_check_branch
      %152 = sbr.rel (0) target = $region25
    $region24: #{tpu_custom_call.1} parent=1 // pred_region
      %s154 = ssub.s32 128, 128
      %155 = vsyncadd [#allocation5], %s154
      %s157 = sshll.u32 [#allocation6], 4
      %s158 = int_to_ptr.vmem [resolvable:$true] %s157
      %160 = dma.vmem_to_hbm [thread:$0]  %s158, 128, %s2, [#allocation5]
    $region25: #{tpu_custom_call.1} parent=1 // pred_fallthru
      _
    // Predicated region
    $region26: #{tpu_custom_call.1} parent=1 // pred_check
      _
    $region27: #{tpu_custom_call.1} parent=1 // pred_check_branch
      %162 = sbr.rel (0) target = $region29
    $region28: #{tpu_custom_call.1} parent=1 // pred_region
      %163 = dma.done [#allocation5], 128
    $region29: #{tpu_custom_call.1} parent=1 // pred_fallthru
      _
    %164 = vsyncpa [#allocation4], 1
    %165 = vsyncpa [#allocation5], 1

</llo_original>
